<compile_context>
chip_gen: v7x
topology: tpu7x:2x2x1
jax: 0.10.0
libtpu: 0.0.40
codegen_flags: <defaults>
</compile_context>

<pallas_src>
import math
import functools

import jax
import jax.numpy as jnp
from jax import lax
from jax.experimental import pallas as pl
from jax.experimental.pallas import tpu as pltpu


def _round_up(x, m):
    return ((x + m - 1) // m) * m


def _cdiv(a, b):
    return (a + b - 1) // b


# ---------------------------------------------------------------------------
# Best-effort hardware introspection (safe fallbacks if APIs are unavailable).
# ---------------------------------------------------------------------------
def _vmem_capacity_bytes():
    try:
        info = pltpu.get_tpu_info()
        for name in ("vmem_capacity_bytes", "vmem_bytes", "vmem_size_bytes"):
            v = getattr(info, name, None)
            if v:
                return int(v)
    except Exception:
        pass
    try:
        kind = jax.devices()[0].device_kind.lower()
        if "v7" in kind:
            return 64 * 1024 * 1024
    except Exception:
        pass
    return 128 * 1024 * 1024   # v5e / v6e physical VMEM


def _num_tensorcores():
    # 2 TensorCores per chip on v4/v5p/v7x; 1 on v5e/v6e.
    try:
        kind = jax.devices()[0].device_kind.lower()
        if "v7" in kind or "v5p" in kind or "v4" in kind:
            return 2
    except Exception:
        pass
    return 1


# ---------------------------------------------------------------------------
# Fused kernel body
#   grid = (num_m_tiles, num_v_tiles)
#   refs: x [tm,H], W1^T [H,E], b1 [1,E], gamma [1,E], beta [1,E],
#         W2^T tile [E,tv], vocab-bias tile [1,tv], out [tm,tv],
#         scratch t [tm,E] (decoder/compute dtype)
# ---------------------------------------------------------------------------
def _fused_head_kernel(x_ref, w1_ref, b1_ref, gamma_ref, beta_ref,
                       w2_ref, vbias_ref, o_ref, t_ref, *, eps):
    j = pl.program_id(1)

    @pl.when(j == 0)
    def _():
        # dense: x @ W1 (W1 pre-transposed to [H, E] at prep time)
        h = jnp.dot(x_ref[...], w1_ref[...], preferred_element_type=jnp.float32)
        h = h + b1_ref[...].astype(jnp.float32)
        # gelu (erf form, matches PyTorch `gelu` in ACT2FN)
        h = h * 0.5 * (1.0 + lax.erf(h * (1.0 / math.sqrt(2.0))))
        # LayerNorm over E (biased variance, like torch.nn.LayerNorm)
        mean = jnp.mean(h, axis=-1, keepdims=True)
        var = jnp.mean(jnp.square(h - mean), axis=-1, keepdims=True)
        h = (h - mean) * lax.rsqrt(var + eps)
        h = h * gamma_ref[...].astype(jnp.float32) + beta_ref[...].astype(jnp.float32)
        # Stored once per M-tile already in the decoder dtype -> no per-j cast.
        t_ref[...] = h.astype(t_ref.dtype)

    # decoder: t @ W2 vocab-tile + bias tile
    out = jnp.dot(t_ref[...], w2_ref[...], preferred_element_type=jnp.float32)
    out = out + vbias_ref[...].astype(jnp.float32)
    o_ref[...] = out.astype(o_ref.dtype)


# ---------------------------------------------------------------------------
# One-time parameter preparation (hoists transpose / pad / cast off the
# per-forward path). Call once; reuse the result for every forward.
# ---------------------------------------------------------------------------
def prepare_params(params, *, compute_dtype=jnp.bfloat16, eps=1e-12, tv=2048):
    dense_w = jnp.asarray(params["dense_w"])       # [E, H]
    dense_b = jnp.asarray(params["dense_b"])       # [E]
    ln_gamma = jnp.asarray(params["ln_gamma"])     # [E]
    ln_beta = jnp.asarray(params["ln_beta"])       # [E]
    decoder_w = jnp.asarray(params["decoder_w"])   # [V, E]
    vocab_bias = jnp.asarray(params["vocab_bias"]) # [V]

    E, _H = dense_w.shape
    V = decoder_w.shape[0]

    # Vocab tiling is fixed here so transpose + pad happen exactly once.
    tv = min(int(tv), _round_up(V, 128))
    nv = _cdiv(V, tv)
    tv = _round_up(_cdiv(V, nv), 128)
    Vp = nv * tv

    w1t = dense_w.T.astype(compute_dtype)          # [H, E]
    w2t = decoder_w.T.astype(compute_dtype)        # [E, V]
    vbias = vocab_bias.astype(jnp.float32)
    if Vp != V:
        w2t = jnp.pad(w2t, ((0, 0), (0, Vp - V)))
        vbias = jnp.pad(vbias, (0, Vp - V))

    return {
        "w1t": w1t,
        "b1": dense_b.astype(jnp.float32).reshape(1, E),
        "gamma": ln_gamma.astype(jnp.float32).reshape(1, E),
        "beta": ln_beta.astype(jnp.float32).reshape(1, E),
        "w2t": w2t,
        "vbias": vbias.reshape(1, Vp),
        "vocab_size": V,
        "tv": tv,
        "eps": eps,
    }


# ---------------------------------------------------------------------------
# Wrapper: full AlbertLMPredictionHead forward
# ---------------------------------------------------------------------------
def albert_lm_prediction_head(hidden_states, prepped, *, tm=1024, out_dtype=None):
    if "w1t" not in prepped:       # accept a raw param dict for convenience
        prepped = prepare_params(prepped)

    w1t, b1 = prepped["w1t"], prepped["b1"]
    gamma, beta = prepped["gamma"], prepped["beta"]
    w2t, vbias = prepped["w2t"], prepped["vbias"]
    V, tv, eps = prepped["vocab_size"], prepped["tv"], prepped["eps"]

    B, S, H = hidden_states.shape
    E = w1t.shape[1]
    Vp = w2t.shape[1]
    nv = Vp // tv

    cdtype = w1t.dtype
    if out_dtype is None:
        out_dtype = cdtype          # bf16 by default -> halves logits writeback
    cbytes = jnp.dtype(cdtype).itemsize
    obytes = jnp.dtype(out_dtype).itemsize

    M = B * S
    x2d = hidden_states.reshape(M, H).astype(cdtype)

    # ---- VMEM-budget-aware tm selection (per TPU generation) ---------------
    budget = min(int(_vmem_capacity_bytes() * 0.75), 96 * 1024 * 1024)
    fixed = H * E * cbytes * 2            # W1^T (worst case double-buffered)
    fixed += E * tv * cbytes * 2          # W2 vocab tile (double-buffered)
    fixed += (3 * E + tv) * 4 * 2         # small bias / LN vectors
    per_row = H * cbytes * 2 + tv * obytes * 2 + E * cbytes   # x dbuf + out dbuf + scratch
    tm_cap = (budget - fixed - (1 << 20)) // per_row
    tm = max(8, (min(int(tm), int(tm_cap)) // 8) * 8)

    # ---- ragged-M tiling: equal smaller tiles instead of a big round-up pad --
    tm = min(tm, _round_up(M, 8))
    nm = _cdiv(M, tm)
    cores = _num_tensorcores()
    if cores > 1 and nm < cores and M >= cores * 8:
        nm = cores                         # keep both TensorCores busy for small M
    tm = _round_up(_cdiv(M, nm), 8)
    Mp = nm * tm
    if Mp != M:
        x2d = jnp.pad(x2d, ((0, Mp - M), (0, 0)))

    grid = (nm, nv)
    kernel = functools.partial(_fused_head_kernel, eps=eps)

    def _resident_spec(shape, single_buffer):
        imap = lambda i, j: (0,) * len(shape)
        if single_buffer:
            return pl.BlockSpec(shape, imap, pipeline_mode=pl.Buffered(1))
        return pl.BlockSpec(shape, imap)

    def _run(single_buffer):
        return pl.pallas_call(
            kernel,
            out_shape=jax.ShapeDtypeStruct((Mp, Vp), out_dtype),
            grid_spec=pltpu.PrefetchScalarGridSpec(
                num_scalar_prefetch=0,
                grid=grid,
                in_specs=[
                    pl.BlockSpec((tm, H), lambda i, j: (i, 0)),     # x m-tile
                    _resident_spec((H, E), single_buffer),          # W1^T (resident)
                    _resident_spec((1, E), single_buffer),          # dense bias
                    _resident_spec((1, E), single_buffer),          # LN gamma
                    _resident_spec((1, E), single_buffer),          # LN beta
                    pl.BlockSpec((E, tv), lambda i, j: (0, j)),     # W2^T vocab tile
                    pl.BlockSpec((1, tv), lambda i, j: (0, j)),     # vocab bias tile
                ],
                out_specs=pl.BlockSpec((tm, tv), lambda i, j: (i, j)),
                scratch_shapes=[pltpu.VMEM((tm, E), cdtype)],
            ),
            compiler_params=pltpu.CompilerParams(
                dimension_semantics=("parallel", "arbitrary"),
                vmem_limit_bytes=int(budget),
            ),
        )(x2d, w1t, b1, gamma, beta, w2t, vbias)

    try:
        logits = _run(True)
    except Exception:
        # Fallback if single-buffer pipeline_mode is unsupported in this JAX build.
        logits = _run(False)

    return logits[:M, :V].reshape(B, S, V)


# ---------------------------------------------------------------------------
# Pure-JAX reference for sanity checking
# ---------------------------------------------------------------------------
def reference_forward(hidden_states, params, *, eps=1e-12):
    x = hidden_states.astype(jnp.float32)
    h = x @ params["dense_w"].T.astype(jnp.float32) + params["dense_b"]
    h = h * 0.5 * (1.0 + lax.erf(h / math.sqrt(2.0)))
    mean = jnp.mean(h, axis=-1, keepdims=True)
    var = jnp.mean(jnp.square(h - mean), axis=-1, keepdims=True)
    h = (h - mean) / jnp.sqrt(var + eps)
    h = h * params["ln_gamma"] + params["ln_beta"]
    return h @ params["decoder_w"].T.astype(jnp.float32) + params["vocab_bias"]


if __name__ == "__main__":
    # Small config consistent with the module:
    #   hidden_size=32, embedding_size=16, vocab_size=250 (non-multiple of 128
    #   to exercise vocab padding), batch=2, seq=8
    B, S, H, E, V = 2, 8, 32, 16, 250
    key = jax.random.PRNGKey(0)
    k0, k1, k2, k3, k4 = jax.random.split(key, 5)

    hidden_states = jax.random.normal(k0, (B, S, H), dtype=jnp.float32)
    params = {
        "dense_w": jax.random.normal(k1, (E, H), dtype=jnp.float32) * 0.05,
        "dense_b": jax.random.normal(k2, (E,), dtype=jnp.float32) * 0.01,
        "ln_gamma": jnp.ones((E,), dtype=jnp.float32),
        "ln_beta": jnp.zeros((E,), dtype=jnp.float32),
        "decoder_w": jax.random.normal(k3, (V, E), dtype=jnp.float32) * 0.05,
        "vocab_bias": jax.random.normal(k4, (V,), dtype=jnp.float32) * 0.01,
    }

    ref = reference_forward(hidden_states, params)

    # f32 compute path (tight tolerance vs. the f32 reference).
    prepped_f32 = prepare_params(params, compute_dtype=jnp.float32)
    out_f32 = jax.block_until_ready(
        albert_lm_prediction_head(hidden_states, prepped_f32, out_dtype=jnp.float32))
    assert out_f32.shape == (B, S, V), out_f32.shape
    assert jnp.allclose(out_f32, ref, atol=1e-4, rtol=1e-4), (
        float(jnp.max(jnp.abs(out_f32 - ref))))

    # Default bf16 compute / bf16 logits path (HBM-optimal); looser tolerance.
    prepped_bf16 = prepare_params(params)   # compute_dtype=bf16
    out_bf16 = jax.block_until_ready(
        albert_lm_prediction_head(hidden_states, prepped_bf16))
    assert out_bf16.shape == (B, S, V), out_bf16.shape
    assert jnp.allclose(out_bf16.astype(jnp.float32), ref, atol=5e-2, rtol=5e-2), (
        float(jnp.max(jnp.abs(out_bf16.astype(jnp.float32) - ref))))

    print("KERNEL_OK")
</pallas_src>

<mosaic_0001>
module attributes {stable_mosaic.version = 11 : i64} {
  func.func @_fused_head_kernel(%arg0: i32, %arg1: i32, %arg2: memref<16x32xf32, #tpu.memory_space<vmem>>, %arg3: memref<32x16xf32, #tpu.memory_space<vmem>>, %arg4: memref<1x16xf32, #tpu.memory_space<vmem>>, %arg5: memref<1x16xf32, #tpu.memory_space<vmem>>, %arg6: memref<1x16xf32, #tpu.memory_space<vmem>>, %arg7: memref<16x256xf32, #tpu.memory_space<vmem>>, %arg8: memref<1x256xf32, #tpu.memory_space<vmem>>, %arg9: memref<16x256xf32, #tpu.memory_space<vmem>>, %arg10: memref<16x16xf32, #tpu.memory_space<vmem>>) attributes {dimension_semantics = [#tpu.dimension_semantics<parallel>, #tpu.dimension_semantics<arbitrary>], iteration_bounds = array<i64: 1, 1>, scalar_prefetch = 0 : i64, scratch_operands = 1 : i64, tpu.core_type = #tpu.core_type<tc>, window_params = [{transform_indices = @transform_0, window_bounds = array<i64: 16, 32>}, {pipeline_mode = #tpu.pipeline_mode<synchronous>, transform_indices = @transform_1, window_bounds = array<i64: 32, 16>}, {pipeline_mode = #tpu.pipeline_mode<synchronous>, transform_indices = @transform_2, window_bounds = array<i64: 1, 16>}, {pipeline_mode = #tpu.pipeline_mode<synchronous>, transform_indices = @transform_3, window_bounds = array<i64: 1, 16>}, {pipeline_mode = #tpu.pipeline_mode<synchronous>, transform_indices = @transform_4, window_bounds = array<i64: 1, 16>}, {transform_indices = @transform_5, window_bounds = array<i64: 16, 256>}, {transform_indices = @transform_6, window_bounds = array<i64: 1, 256>}, {transform_indices = @transform_7, window_bounds = array<i64: 16, 256>}]} {
    %c0_i32 = arith.constant 0 : i32
    %0 = arith.cmpi eq, %arg1, %c0_i32 : i32
    %1 = arith.extui %0 : i1 to i32
    %c0_i32_0 = arith.constant 0 : i32
    %2 = arith.cmpi ne, %1, %c0_i32_0 : i32
    scf.if %2 {
      %c0_8 = arith.constant 0 : index
      %c0_9 = arith.constant 0 : index
      %10 = vector.load %arg2[%c0_8, %c0_9] : memref<16x32xf32, #tpu.memory_space<vmem>>, vector<16x32xf32>
      %c0_10 = arith.constant 0 : index
      %c0_11 = arith.constant 0 : index
      %11 = vector.load %arg3[%c0_10, %c0_11] : memref<32x16xf32, #tpu.memory_space<vmem>>, vector<32x16xf32>
      %cst_12 = arith.constant dense<0.000000e+00> : vector<16x16xf32>
      %12 = tpu.matmul %10, %11, %cst_12 {dimension_numbers = #tpu.dot_dimension_numbers<[1], [0], [0], [1], [0, 0, 1, 1], [], []>} : vector<16x32xf32>, vector<32x16xf32>, vector<16x16xf32> -> vector<16x16xf32>
      %c0_13 = arith.constant 0 : index
      %c0_14 = arith.constant 0 : index
      %13 = vector.load %arg4[%c0_13, %c0_14] : memref<1x16xf32, #tpu.memory_space<vmem>>, vector<1x16xf32>
      %14 = vector.broadcast %13 : vector<1x16xf32> to vector<16x16xf32>
      %15 = arith.addf %12, %14 : vector<16x16xf32>
      %cst_15 = arith.constant 5.000000e-01 : f32
      %16 = vector.broadcast %cst_15 : f32 to vector<16x16xf32>
      %17 = arith.mulf %15, %16 : vector<16x16xf32>
      %cst_16 = arith.constant 0.707106769 : f32
      %18 = vector.broadcast %cst_16 : f32 to vector<16x16xf32>
      %19 = arith.mulf %15, %18 : vector<16x16xf32>
      %20 = math.erf %19 : vector<16x16xf32>
      %cst_17 = arith.constant 1.000000e+00 : f32
      %21 = vector.broadcast %cst_17 : f32 to vector<16x16xf32>
      %22 = arith.addf %21, %20 : vector<16x16xf32>
      %23 = arith.mulf %17, %22 : vector<16x16xf32>
      %cst_18 = arith.constant dense<0.000000e+00> : vector<16xf32>
      %24 = vector.multi_reduction <add>, %23, %cst_18 [1] : vector<16x16xf32> to vector<16xf32>
      %25 = vector.shape_cast %24 : vector<16xf32> to vector<16x1xf32>
      %cst_19 = arith.constant 1.600000e+01 : f32
      %26 = vector.broadcast %cst_19 : f32 to vector<16x1xf32>
      %27 = arith.divf %25, %26 : vector<16x1xf32>
      %28 = vector.broadcast %27 : vector<16x1xf32> to vector<16x16xf32>
      %29 = arith.subf %23, %28 : vector<16x16xf32>
      %30 = arith.mulf %29, %29 : vector<16x16xf32>
      %cst_20 = arith.constant dense<0.000000e+00> : vector<16xf32>
      %31 = vector.multi_reduction <add>, %30, %cst_20 [1] : vector<16x16xf32> to vector<16xf32>
      %32 = vector.shape_cast %31 : vector<16xf32> to vector<16x1xf32>
      %cst_21 = arith.constant 1.600000e+01 : f32
      %33 = vector.broadcast %cst_21 : f32 to vector<16x1xf32>
      %34 = arith.divf %32, %33 : vector<16x1xf32>
      %35 = vector.broadcast %27 : vector<16x1xf32> to vector<16x16xf32>
      %36 = arith.subf %23, %35 : vector<16x16xf32>
      %cst_22 = arith.constant 9.99999996E-13 : f32
      %37 = vector.broadcast %cst_22 : f32 to vector<16x1xf32>
      %38 = arith.addf %34, %37 : vector<16x1xf32>
      %39 = math.rsqrt %38 : vector<16x1xf32>
      %40 = vector.broadcast %39 : vector<16x1xf32> to vector<16x16xf32>
      %41 = arith.mulf %36, %40 : vector<16x16xf32>
      %c0_23 = arith.constant 0 : index
      %c0_24 = arith.constant 0 : index
      %42 = vector.load %arg5[%c0_23, %c0_24] : memref<1x16xf32, #tpu.memory_space<vmem>>, vector<1x16xf32>
      %43 = vector.broadcast %42 : vector<1x16xf32> to vector<16x16xf32>
      %44 = arith.mulf %41, %43 : vector<16x16xf32>
      %c0_25 = arith.constant 0 : index
      %c0_26 = arith.constant 0 : index
      %45 = vector.load %arg6[%c0_25, %c0_26] : memref<1x16xf32, #tpu.memory_space<vmem>>, vector<1x16xf32>
      %46 = vector.broadcast %45 : vector<1x16xf32> to vector<16x16xf32>
      %47 = arith.addf %44, %46 : vector<16x16xf32>
      %c0_27 = arith.constant 0 : index
      %c0_28 = arith.constant 0 : index
      %48 = vector.load %arg10[%c0_27, %c0_28] : memref<16x16xf32, #tpu.memory_space<vmem>>, vector<16x16xf32>
      tpu.vector_store %arg10[%c0_27, %c0_28], %47 {strides = array<i32>} : memref<16x16xf32, #tpu.memory_space<vmem>>, vector<16x16xf32>,
    } else {
    }
    %c0 = arith.constant 0 : index
    %c0_1 = arith.constant 0 : index
    %3 = vector.load %arg10[%c0, %c0_1] : memref<16x16xf32, #tpu.memory_space<vmem>>, vector<16x16xf32>
    %c0_2 = arith.constant 0 : index
    %c0_3 = arith.constant 0 : index
    %4 = vector.load %arg7[%c0_2, %c0_3] : memref<16x256xf32, #tpu.memory_space<vmem>>, vector<16x256xf32>
    %cst = arith.constant dense<0.000000e+00> : vector<16x256xf32>
    %5 = tpu.matmul %3, %4, %cst {dimension_numbers = #tpu.dot_dimension_numbers<[1], [0], [0], [1], [0, 0, 1, 1], [], []>} : vector<16x16xf32>, vector<16x256xf32>, vector<16x256xf32> -> vector<16x256xf32>
    %c0_4 = arith.constant 0 : index
    %c0_5 = arith.constant 0 : index
    %6 = vector.load %arg8[%c0_4, %c0_5] : memref<1x256xf32, #tpu.memory_space<vmem>>, vector<1x256xf32>
    %7 = vector.broadcast %6 : vector<1x256xf32> to vector<16x256xf32>
    %8 = arith.addf %5, %7 : vector<16x256xf32>
    %c0_6 = arith.constant 0 : index
    %c0_7 = arith.constant 0 : index
    %9 = vector.load %arg9[%c0_6, %c0_7] : memref<16x256xf32, #tpu.memory_space<vmem>>, vector<16x256xf32>
    tpu.vector_store %arg9[%c0_6, %c0_7], %8 {strides = array<i32>} : memref<16x256xf32, #tpu.memory_space<vmem>>, vector<16x256xf32>,
    return
  }
  func.func @transform_0(%arg0: i32, %arg1: i32) -> (i32, i32) {
    %c0_i32 = arith.constant 0 : i32
    %c0_i32_0 = arith.constant 0 : i32
    return %arg0, %c0_i32 : i32, i32
  }
  func.func @transform_1(%arg0: i32, %arg1: i32) -> (i32, i32) {
    %c0_i32 = arith.constant 0 : i32
    %c0_i32_0 = arith.constant 0 : i32
    %c0_i32_1 = arith.constant 0 : i32
    return %c0_i32, %c0_i32_0 : i32, i32
  }
  func.func @transform_2(%arg0: i32, %arg1: i32) -> (i32, i32) {
    %c0_i32 = arith.constant 0 : i32
    %c0_i32_0 = arith.constant 0 : i32
    %c0_i32_1 = arith.constant 0 : i32
    return %c0_i32, %c0_i32_0 : i32, i32
  }
  func.func @transform_3(%arg0: i32, %arg1: i32) -> (i32, i32) {
    %c0_i32 = arith.constant 0 : i32
    %c0_i32_0 = arith.constant 0 : i32
    %c0_i32_1 = arith.constant 0 : i32
    return %c0_i32, %c0_i32_0 : i32, i32
  }
  func.func @transform_4(%arg0: i32, %arg1: i32) -> (i32, i32) {
    %c0_i32 = arith.constant 0 : i32
    %c0_i32_0 = arith.constant 0 : i32
    %c0_i32_1 = arith.constant 0 : i32
    return %c0_i32, %c0_i32_0 : i32, i32
  }
  func.func @transform_5(%arg0: i32, %arg1: i32) -> (i32, i32) {
    %c0_i32 = arith.constant 0 : i32
    %c0_i32_0 = arith.constant 0 : i32
    return %c0_i32, %arg1 : i32, i32
  }
  func.func @transform_6(%arg0: i32, %arg1: i32) -> (i32, i32) {
    %c0_i32 = arith.constant 0 : i32
    %c0_i32_0 = arith.constant 0 : i32
    return %c0_i32, %arg1 : i32, i32
  }
  func.func @transform_7(%arg0: i32, %arg1: i32) -> (i32, i32) {
    %c0_i32 = arith.constant 0 : i32
    return %arg0, %arg1 : i32, i32
  }
}

module attributes {stable_mosaic.version = 11 : i64} {
  func.func @_fused_head_kernel(%arg0: i32, %arg1: i32, %arg2: memref<16x32xf32, #tpu.memory_space<vmem>>, %arg3: memref<32x16xf32, #tpu.memory_space<vmem>>, %arg4: memref<1x16xf32, #tpu.memory_space<vmem>>, %arg5: memref<1x16xf32, #tpu.memory_space<vmem>>, %arg6: memref<1x16xf32, #tpu.memory_space<vmem>>, %arg7: memref<16x256xf32, #tpu.memory_space<vmem>>, %arg8: memref<1x256xf32, #tpu.memory_space<vmem>>, %arg9: memref<16x256xf32, #tpu.memory_space<vmem>>, %arg10: memref<16x16xf32, #tpu.memory_space<vmem>>) attributes {dimension_semantics = [#tpu.dimension_semantics<parallel>, #tpu.dimension_semantics<arbitrary>], iteration_bounds = array<i64: 1, 1>, scalar_prefetch = 0 : i64, scratch_operands = 1 : i64, tpu.core_type = #tpu.core_type<tc>, window_params = [{transform_indices = @transform_0, window_bounds = array<i64: 16, 32>}, {pipeline_mode = #tpu.pipeline_mode<synchronous>, transform_indices = @transform_1, window_bounds = array<i64: 32, 16>}, {pipeline_mode = #tpu.pipeline_mode<synchronous>, transform_indices = @transform_2, window_bounds = array<i64: 1, 16>}, {pipeline_mode = #tpu.pipeline_mode<synchronous>, transform_indices = @transform_3, window_bounds = array<i64: 1, 16>}, {pipeline_mode = #tpu.pipeline_mode<synchronous>, transform_indices = @transform_4, window_bounds = array<i64: 1, 16>}, {transform_indices = @transform_5, window_bounds = array<i64: 16, 256>}, {transform_indices = @transform_6, window_bounds = array<i64: 1, 256>}, {transform_indices = @transform_7, window_bounds = array<i64: 16, 256>}]} {
    %c0_i32 = arith.constant 0 : i32
    %0 = arith.cmpi eq, %arg1, %c0_i32 : i32
    %1 = arith.extui %0 : i1 to i32
    %c0_i32_0 = arith.constant 0 : i32
    %2 = arith.cmpi ne, %1, %c0_i32_0 : i32
    scf.if %2 {
      %c0_8 = arith.constant 0 : index
      %c0_9 = arith.constant 0 : index
      %10 = vector.load %arg2[%c0_8, %c0_9] : memref<16x32xf32, #tpu.memory_space<vmem>>, vector<16x32xf32>
      %c0_10 = arith.constant 0 : index
      %c0_11 = arith.constant 0 : index
      %11 = vector.load %arg3[%c0_10, %c0_11] : memref<32x16xf32, #tpu.memory_space<vmem>>, vector<32x16xf32>
      %cst_12 = arith.constant dense<0.000000e+00> : vector<16x16xf32>
      %12 = tpu.matmul %10, %11, %cst_12 {dimension_numbers = #tpu.dot_dimension_numbers<[1], [0], [0], [1], [0, 0, 1, 1], [], []>} : vector<16x32xf32>, vector<32x16xf32>, vector<16x16xf32> -> vector<16x16xf32>
      %c0_13 = arith.constant 0 : index
      %c0_14 = arith.constant 0 : index
      %13 = vector.load %arg4[%c0_13, %c0_14] : memref<1x16xf32, #tpu.memory_space<vmem>>, vector<1x16xf32>
      %14 = vector.broadcast %13 : vector<1x16xf32> to vector<16x16xf32>
      %15 = arith.addf %12, %14 : vector<16x16xf32>
      %cst_15 = arith.constant 5.000000e-01 : f32
      %16 = vector.broadcast %cst_15 : f32 to vector<16x16xf32>
      %17 = arith.mulf %15, %16 : vector<16x16xf32>
      %cst_16 = arith.constant 0.707106769 : f32
      %18 = vector.broadcast %cst_16 : f32 to vector<16x16xf32>
      %19 = arith.mulf %15, %18 : vector<16x16xf32>
      %20 = math.erf %19 : vector<16x16xf32>
      %cst_17 = arith.constant 1.000000e+00 : f32
      %21 = vector.broadcast %cst_17 : f32 to vector<16x16xf32>
      %22 = arith.addf %21, %20 : vector<16x16xf32>
      %23 = arith.mulf %17, %22 : vector<16x16xf32>
      %cst_18 = arith.constant dense<0.000000e+00> : vector<16xf32>
      %24 = vector.multi_reduction <add>, %23, %cst_18 [1] : vector<16x16xf32> to vector<16xf32>
      %25 = vector.shape_cast %24 : vector<16xf32> to vector<16x1xf32>
      %cst_19 = arith.constant 1.600000e+01 : f32
      %26 = vector.broadcast %cst_19 : f32 to vector<16x1xf32>
      %27 = arith.divf %25, %26 : vector<16x1xf32>
      %28 = vector.broadcast %27 : vector<16x1xf32> to vector<16x16xf32>
      %29 = arith.subf %23, %28 : vector<16x16xf32>
      %30 = arith.mulf %29, %29 : vector<16x16xf32>
      %cst_20 = arith.constant dense<0.000000e+00> : vector<16xf32>
      %31 = vector.multi_reduction <add>, %30, %cst_20 [1] : vector<16x16xf32> to vector<16xf32>
      %32 = vector.shape_cast %31 : vector<16xf32> to vector<16x1xf32>
      %cst_21 = arith.constant 1.600000e+01 : f32
      %33 = vector.broadcast %cst_21 : f32 to vector<16x1xf32>
      %34 = arith.divf %32, %33 : vector<16x1xf32>
      %35 = vector.broadcast %27 : vector<16x1xf32> to vector<16x16xf32>
      %36 = arith.subf %23, %35 : vector<16x16xf32>
      %cst_22 = arith.constant 9.99999996E-13 : f32
      %37 = vector.broadcast %cst_22 : f32 to vector<16x1xf32>
      %38 = arith.addf %34, %37 : vector<16x1xf32>
      %39 = math.rsqrt %38 : vector<16x1xf32>
      %40 = vector.broadcast %39 : vector<16x1xf32> to vector<16x16xf32>
      %41 = arith.mulf %36, %40 : vector<16x16xf32>
      %c0_23 = arith.constant 0 : index
      %c0_24 = arith.constant 0 : index
      %42 = vector.load %arg5[%c0_23, %c0_24] : memref<1x16xf32, #tpu.memory_space<vmem>>, vector<1x16xf32>
      %43 = vector.broadcast %42 : vector<1x16xf32> to vector<16x16xf32>
      %44 = arith.mulf %41, %43 : vector<16x16xf32>
      %c0_25 = arith.constant 0 : index
      %c0_26 = arith.constant 0 : index
      %45 = vector.load %arg6[%c0_25, %c0_26] : memref<1x16xf32, #tpu.memory_space<vmem>>, vector<1x16xf32>
      %46 = vector.broadcast %45 : vector<1x16xf32> to vector<16x16xf32>
      %47 = arith.addf %44, %46 : vector<16x16xf32>
      %c0_27 = arith.constant 0 : index
      %c0_28 = arith.constant 0 : index
      %48 = vector.load %arg10[%c0_27, %c0_28] : memref<16x16xf32, #tpu.memory_space<vmem>>, vector<16x16xf32>
      tpu.vector_store %arg10[%c0_27, %c0_28], %47 {strides = array<i32>} : memref<16x16xf32, #tpu.memory_space<vmem>>, vector<16x16xf32>,
    } else {
    }
    %c0 = arith.constant 0 : index
    %c0_1 = arith.constant 0 : index
    %3 = vector.load %arg10[%c0, %c0_1] : memref<16x16xf32, #tpu.memory_space<vmem>>, vector<16x16xf32>
    %c0_2 = arith.constant 0 : index
    %c0_3 = arith.constant 0 : index
    %4 = vector.load %arg7[%c0_2, %c0_3] : memref<16x256xf32, #tpu.memory_space<vmem>>, vector<16x256xf32>
    %cst = arith.constant dense<0.000000e+00> : vector<16x256xf32>
    %5 = tpu.matmul %3, %4, %cst {dimension_numbers = #tpu.dot_dimension_numbers<[1], [0], [0], [1], [0, 0, 1, 1], [], []>} : vector<16x16xf32>, vector<16x256xf32>, vector<16x256xf32> -> vector<16x256xf32>
    %c0_4 = arith.constant 0 : index
    %c0_5 = arith.constant 0 : index
    %6 = vector.load %arg8[%c0_4, %c0_5] : memref<1x256xf32, #tpu.memory_space<vmem>>, vector<1x256xf32>
    %7 = vector.broadcast %6 : vector<1x256xf32> to vector<16x256xf32>
    %8 = arith.addf %5, %7 : vector<16x256xf32>
    %c0_6 = arith.constant 0 : index
    %c0_7 = arith.constant 0 : index
    %9 = vector.load %arg9[%c0_6, %c0_7] : memref<16x256xf32, #tpu.memory_space<vmem>>, vector<16x256xf32>
    tpu.vector_store %arg9[%c0_6, %c0_7], %8 {strides = array<i32>} : memref<16x256xf32, #tpu.memory_space<vmem>>, vector<16x256xf32>,
    return
  }
  func.func @transform_0(%arg0: i32, %arg1: i32) -> (i32, i32) {
    %c0_i32 = arith.constant 0 : i32
    %c0_i32_0 = arith.constant 0 : i32
    return %arg0, %c0_i32 : i32, i32
  }
  func.func @transform_1(%arg0: i32, %arg1: i32) -> (i32, i32) {
    %c0_i32 = arith.constant 0 : i32
    %c0_i32_0 = arith.constant 0 : i32
    %c0_i32_1 = arith.constant 0 : i32
    return %c0_i32, %c0_i32_0 : i32, i32
  }
  func.func @transform_2(%arg0: i32, %arg1: i32) -> (i32, i32) {
    %c0_i32 = arith.constant 0 : i32
    %c0_i32_0 = arith.constant 0 : i32
    %c0_i32_1 = arith.constant 0 : i32
    return %c0_i32, %c0_i32_0 : i32, i32
  }
  func.func @transform_3(%arg0: i32, %arg1: i32) -> (i32, i32) {
    %c0_i32 = arith.constant 0 : i32
    %c0_i32_0 = arith.constant 0 : i32
    %c0_i32_1 = arith.constant 0 : i32
    return %c0_i32, %c0_i32_0 : i32, i32
  }
  func.func @transform_4(%arg0: i32, %arg1: i32) -> (i32, i32) {
    %c0_i32 = arith.constant 0 : i32
    %c0_i32_0 = arith.constant 0 : i32
    %c0_i32_1 = arith.constant 0 : i32
    return %c0_i32, %c0_i32_0 : i32, i32
  }
  func.func @transform_5(%arg0: i32, %arg1: i32) -> (i32, i32) {
    %c0_i32 = arith.constant 0 : i32
    %c0_i32_0 = arith.constant 0 : i32
    return %c0_i32, %arg1 : i32, i32
  }
  func.func @transform_6(%arg0: i32, %arg1: i32) -> (i32, i32) {
    %c0_i32 = arith.constant 0 : i32
    %c0_i32_0 = arith.constant 0 : i32
    return %c0_i32, %arg1 : i32, i32
  }
  func.func @transform_7(%arg0: i32, %arg1: i32) -> (i32, i32) {
    %c0_i32 = arith.constant 0 : i32
    return %arg0, %arg1 : i32, i32
  }
}

</mosaic_0001>

<llo_original>
// kernel: tpu_custom_call.1
$region0: #{tpu_custom_call.1}
  #allocation0 [shape = 'u32[]', space=smem, size = 0x4, offset = 0x4, fixed_abs, tag = 'smem constant byte address 0x4 - core index']
  #allocation1 [shape = 'u32[144,128]{1,0:T(1,128)}', space=vmem, size = 0x12000, scoped, tag = 'internal scratch']
  #allocation2 [shape = 'f32[16,16]{1,0:T(8,128)}', space=vmem, size = 0x2000, scoped, tag = 'scratch operand']
  %s0 = inlined_call_operand.hbm [shape: f32[16,32], index: 0, kind: input, shape index: {}]
  %s1 = inlined_call_operand.hbm [shape: f32[32,16], index: 1, kind: input, shape index: {}]
  %s2 = inlined_call_operand.hbm [shape: f32[1,16], index: 2, kind: input, shape index: {}]
  %s3 = inlined_call_operand.hbm [shape: f32[1,16], index: 3, kind: input, shape index: {}]
  %s4 = inlined_call_operand.hbm [shape: f32[1,16], index: 4, kind: input, shape index: {}]
  %s5 = inlined_call_operand.hbm [shape: f32[16,256], index: 5, kind: input, shape index: {}]
  %s6 = inlined_call_operand.hbm [shape: f32[1,256], index: 6, kind: input, shape index: {}]
  %s7 = inlined_call_operand.hbm [shape: f32[16,256], index: 7, kind: output, shape index: {}]
  %s8 = sld [smem:[#allocation0]]
  $region70: #{tpu_custom_call.1} parent=0
    _
  %s10 = ssub.s32 1, %s8
  %s11 = scalar_select 0, %s10, %s8
  $region1: #{tpu_custom_call.1} parent=0
    #allocation3 [shape = 'u8[8192]{0}', space=vmem, size = 0x2000, scoped, tag = 'input window, operand 0, single buffered']
    #allocation4 [shape = 's32[1]{0}', space=sflag, size = 0x4, scoped, tag = 'scoped memory for tpu_custom_call.1']
    #allocation5 [shape = 's32[1]{0}', space=sflag, size = 0x4, scoped, tag = 'scoped memory for tpu_custom_call.1']
    #allocation6 [shape = 'u8[16384]{0}', space=vmem, size = 0x4000, scoped, tag = 'input window, operand 1, single buffered']
    #allocation7 [shape = 's32[1]{0}', space=sflag, size = 0x4, scoped, tag = 'scoped memory for tpu_custom_call.1']
    #allocation8 [shape = 'u8[512]{0}', space=vmem, size = 0x400, scoped, tag = 'input window, operand 2, single buffered']
    #allocation9 [shape = 'u8[512]{0}', space=vmem, size = 0x400, scoped, tag = 'input window, operand 3, single buffered']
    #allocation10 [shape = 's32[1]{0}', space=sflag, size = 0x4, scoped, tag = 'scoped memory for tpu_custom_call.1']
    #allocation11 [shape = 'u8[512]{0}', space=vmem, size = 0x400, scoped, tag = 'input window, operand 4, single buffered']
    #allocation12 [shape = 'u8[16384]{0}', space=vmem, size = 0x4000, scoped, tag = 'input window, operand 5, single buffered']
    #allocation13 [shape = 's32[1]{0}', space=sflag, size = 0x4, scoped, tag = 'scoped memory for tpu_custom_call.1']
    #allocation14 [shape = 'u8[1024]{0}', space=vmem, size = 0x400, scoped, tag = 'input window, operand 6, single buffered']
    #allocation15 [shape = 'u8[16384]{0}', space=vmem, size = 0x4000, scoped, tag = 'output window, operand 0, single buffered']
    %12 = vsyncpa [#allocation4], 0
    %13 = vsyncpa [#allocation7], 0
    %14 = vsyncpa [#allocation10], 0
    %15 = vsyncpa [#allocation13], 0
    %16 = vsyncpa [#allocation5], 0
    // Predicated region
    $region2: #{tpu_custom_call.1} parent=1 // pred_check
      _
    $region3: #{tpu_custom_call.1} parent=1 // pred_check_branch
      %18 = sbr.rel (0) target = $region5
    $region4: #{tpu_custom_call.1} parent=1 // pred_region
      %s20 = ssub.s32 256, 256
      %21 = vsyncadd [#allocation4], %s20
      %s22 = sshll.u32 [#allocation3], 4
      %s23 = int_to_ptr.vmem [resolvable:$true] %s22
      %28 = dma.hbm_to_vmem [thread:$0]  %s0, 256, %s23, [#allocation4], 128, 128, 8
    $region5: #{tpu_custom_call.1} parent=1 // pred_fallthru
      _
    // Predicated region
    $region6: #{tpu_custom_call.1} parent=1 // pred_check
      _
    $region7: #{tpu_custom_call.1} parent=1 // pred_check_branch
      %30 = sbr.rel (0) target = $region9
    $region8: #{tpu_custom_call.1} parent=1 // pred_region
      %s32 = ssub.s32 512, 512
      %33 = vsyncadd [#allocation7], %s32
      %s34 = sshll.u32 [#allocation6], 4
      %s35 = int_to_ptr.vmem [resolvable:$true] %s34
      %40 = dma.hbm_to_vmem [thread:$0]  %s1, 512, %s35, [#allocation7], 128, 128, 8
    $region9: #{tpu_custom_call.1} parent=1 // pred_fallthru
      _
    // Predicated region
    $region10: #{tpu_custom_call.1} parent=1 // pred_check
      _
    $region11: #{tpu_custom_call.1} parent=1 // pred_check_branch
      %42 = sbr.rel (0) target = $region13
    $region12: #{tpu_custom_call.1} parent=1 // pred_region
      %s44 = ssub.s32 16, 16
      %45 = vsyncadd [#allocation7], %s44
      %s47 = sshll.u32 [#allocation8], 4
      %s48 = int_to_ptr.vmem [resolvable:$true] %s47
      %50 = dma.hbm_to_vmem [thread:$0]  %s2, 16, %s48, [#allocation7]
    $region13: #{tpu_custom_call.1} parent=1 // pred_fallthru
      _
    // Predicated region
    $region14: #{tpu_custom_call.1} parent=1 // pred_check
      _
    $region15: #{tpu_custom_call.1} parent=1 // pred_check_branch
      %52 = sbr.rel (0) target = $region17
    $region16: #{tpu_custom_call.1} parent=1 // pred_region
      %s54 = ssub.s32 16, 16
      %55 = vsyncadd [#allocation10], %s54
      %s57 = sshll.u32 [#allocation9], 4
      %s58 = int_to_ptr.vmem [resolvable:$true] %s57
      %60 = dma.hbm_to_vmem [thread:$0]  %s3, 16, %s58, [#allocation10]
    $region17: #{tpu_custom_call.1} parent=1 // pred_fallthru
      _
    // Predicated region
    $region18: #{tpu_custom_call.1} parent=1 // pred_check
      _
    $region19: #{tpu_custom_call.1} parent=1 // pred_check_branch
      %62 = sbr.rel (0) target = $region21
    $region20: #{tpu_custom_call.1} parent=1 // pred_region
      %s64 = ssub.s32 16, 16
      %65 = vsyncadd [#allocation10], %s64
      %s67 = sshll.u32 [#allocation11], 4
      %s68 = int_to_ptr.vmem [resolvable:$true] %s67
      %70 = dma.hbm_to_vmem [thread:$0]  %s4, 16, %s68, [#allocation10]
    $region21: #{tpu_custom_call.1} parent=1 // pred_fallthru
      _
    // Predicated region
    $region22: #{tpu_custom_call.1} parent=1 // pred_check
      _
    $region23: #{tpu_custom_call.1} parent=1 // pred_check_branch
      %72 = sbr.rel (0) target = $region25
    $region24: #{tpu_custom_call.1} parent=1 // pred_region
      %s74 = ssub.s32 512, 512
      %75 = vsyncadd [#allocation13], %s74
      %s76 = sshll.u32 [#allocation12], 4
      %s77 = int_to_ptr.vmem [resolvable:$true] %s76
      %82 = dma.hbm_to_vmem [thread:$0]  %s5, 512, %s77, [#allocation13], 256, 256, 16
    $region25: #{tpu_custom_call.1} parent=1 // pred_fallthru
      _
    // Predicated region
    $region26: #{tpu_custom_call.1} parent=1 // pred_check
      _
    $region27: #{tpu_custom_call.1} parent=1 // pred_check_branch
      %84 = sbr.rel (0) target = $region29
    $region28: #{tpu_custom_call.1} parent=1 // pred_region
      %s86 = ssub.s32 32, 32
      %87 = vsyncadd [#allocation13], %s86
      %s89 = sshll.u32 [#allocation14], 4
      %s90 = int_to_ptr.vmem [resolvable:$true] %s89
      %92 = dma.hbm_to_vmem [thread:$0]  %s6, 32, %s90, [#allocation13]
    $region29: #{tpu_custom_call.1} parent=1 // pred_fallthru
      _
    // Predicated region
    $region30: #{tpu_custom_call.1} parent=1 // pred_check
      _
    $region31: #{tpu_custom_call.1} parent=1 // pred_check_branch
      %94 = sbr.rel (0) target = $region33
    $region32: #{tpu_custom_call.1} parent=1 // pred_region
      %95 = dma.done [#allocation4], 256
    $region33: #{tpu_custom_call.1} parent=1 // pred_fallthru
      _
    // Predicated region
    $region34: #{tpu_custom_call.1} parent=1 // pred_check
      _
    $region35: #{tpu_custom_call.1} parent=1 // pred_check_branch
      %97 = sbr.rel (0) target = $region37
    $region36: #{tpu_custom_call.1} parent=1 // pred_region
      %98 = dma.done [#allocation7], 512
    $region37: #{tpu_custom_call.1} parent=1 // pred_fallthru
      _
    // Predicated region
    $region38: #{tpu_custom_call.1} parent=1 // pred_check
      _
    $region39: #{tpu_custom_call.1} parent=1 // pred_check_branch
      %100 = sbr.rel (0) target = $region41
    $region40: #{tpu_custom_call.1} parent=1 // pred_region
      %101 = dma.done [#allocation7], 16
    $region41: #{tpu_custom_call.1} parent=1 // pred_fallthru
      _
    // Predicated region
    $region42: #{tpu_custom_call.1} parent=1 // pred_check
      _
    $region43: #{tpu_custom_call.1} parent=1 // pred_check_branch
      %103 = sbr.rel (0) target = $region45
    $region44: #{tpu_custom_call.1} parent=1 // pred_region
      %104 = dma.done [#allocation10], 16
    $region45: #{tpu_custom_call.1} parent=1 // pred_fallthru
      _
    // Predicated region
    $region46: #{tpu_custom_call.1} parent=1 // pred_check
      _
    $region47: #{tpu_custom_call.1} parent=1 // pred_check_branch
      %106 = sbr.rel (0) target = $region49
    $region48: #{tpu_custom_call.1} parent=1 // pred_region
      %107 = dma.done [#allocation10], 16
    $region49: #{tpu_custom_call.1} parent=1 // pred_fallthru
      _
    // Predicated region
    $region50: #{tpu_custom_call.1} parent=1 // pred_check
      _
    $region51: #{tpu_custom_call.1} parent=1 // pred_check_branch
      %109 = sbr.rel (0) target = $region53
    $region52: #{tpu_custom_call.1} parent=1 // pred_region
      %110 = dma.done [#allocation13], 512
    $region53: #{tpu_custom_call.1} parent=1 // pred_fallthru
      _
    // Predicated region
    $region54: #{tpu_custom_call.1} parent=1 // pred_check
      _
    $region55: #{tpu_custom_call.1} parent=1 // pred_check_branch
      %112 = sbr.rel (0) target = $region57
    $region56: #{tpu_custom_call.1} parent=1 // pred_region
      %113 = dma.done [#allocation13], 32
    $region57: #{tpu_custom_call.1} parent=1 // pred_fallthru
      _
    %p114 = scmp.eq.s32.totalorder 0, 0
    // Predicated region
    $region58: #{tpu_custom_call.1} parent=1 // pred_check
      %p115 = pneg %p114
    $region59: #{tpu_custom_call.1} parent=1 // pred_check_branch
      %117 = sbr.rel (%p115) target = $region61
    $region60: #{tpu_custom_call.1} parent=1 // pred_region
      %v118 = vld [vmem:[#allocation3] sm:$0xff]
      %v119 = vld [vmem:[#allocation3 + $0x8] sm:$0xff]
      %v120 = vld [vmem:[#allocation6] sm:$0xff]
      %v121 = vld [vmem:[#allocation6 + $0x8] sm:$0xff]
      %v122 = vld [vmem:[#allocation6 + $0x10] sm:$0xff]
      %v123 = vld [vmem:[#allocation6 + $0x18] sm:$0xff]
      %v124 = vld [vmem:[#allocation8] sm:$0x1]
      %v126 = vlaneseq
      %v127 = vshrl.u32 %v126, 7
      %v128 = vsub.s32 0, %v127
      %v129 = vrot.slane %v124, %v128
      %vm131 = vcmask 261120
      %v133 = vsel %vm131, %v118, 0
      %v136 = vsel %vm131, %v119, 0
      %138 = vmatprep.subr.mxu0 0.0
      %139 = vmatpush1.msra.mxu0 %v120
      %140 = vmatprep.subr.mxu0 0.0
      %141 = vmatpush1.msra.mxu0 %v121
      %142 = vmatprep.subr.mxu0 0.0
      %143 = vmatpush1.msra.mxu0 %v122
      %144 = vmatprep.subr.mxu0 0.0
      %145 = vmatpush1.msra.mxu0 %v123
      %146 = vmatprep.subr.mxu0 0.0
      %147 = vmatpush1.msra.mxu0 0.0
      %148 = vmatprep.subr.mxu0 0.0
      %149 = vmatpush1.msra.mxu0 0.0
      %150 = vmatprep.subr.mxu0 0.0
      %151 = vmatpush1.msra.mxu0 0.0
      %152 = vmatprep.subr.mxu0 0.0
      %153 = vmatpush1.msra.mxu0 0.0
      %154 = vmatprep.subr.mxu0 0.0
      %155 = vmatpush1.msra.mxu0 0.0
      %156 = vmatprep.subr.mxu0 0.0
      %157 = vmatpush1.msra.mxu0 0.0
      %158 = vmatprep.subr.mxu0 0.0
      %159 = vmatpush1.msra.mxu0 0.0
      %160 = vmatprep.subr.mxu0 0.0
      %161 = vmatpush1.msra.mxu0 0.0
      %162 = vmatprep.subr.mxu0 0.0
      %163 = vmatpush1.msra.mxu0 0.0
      %164 = vmatprep.subr.mxu0 0.0
      %165 = vmatpush1.msra.mxu0 0.0
      %166 = vmatprep.subr.mxu0 0.0
      %167 = vmatpush1.msra.mxu0 0.0
      %168 = vmatprep.subr.mxu0 0.0
      %169 = vmatpush1.msra.mxu0 0.0
      %170 = vmatprep.subr.mxu0 0.0
      %171 = vmatpush1.msra.mxu0 0.0
      %172 = vmatprep.subr.mxu0 0.0
      %173 = vmatpush1.msra.mxu0 0.0
      %174 = vmatprep.subr.mxu0 0.0
      %175 = vmatpush1.msra.mxu0 0.0
      %176 = vmatprep.subr.mxu0 0.0
      %177 = vmatpush1.msra.mxu0 0.0
      %178 = vmatprep.subr.mxu0 0.0
      %179 = vmatpush1.msra.mxu0 0.0
      %180 = vmatprep.subr.mxu0 0.0
      %181 = vmatpush1.msra.mxu0 0.0
      %182 = vmatprep.subr.mxu0 0.0
      %183 = vmatpush1.msra.mxu0 0.0
      %184 = vmatprep.subr.mxu0 0.0
      %185 = vmatpush1.msra.mxu0 0.0
      %186 = vmatprep.subr.mxu0 0.0
      %187 = vmatpush1.msra.mxu0 0.0
      %188 = vmatprep.subr.mxu0 0.0
      %189 = vmatpush1.msra.mxu0 0.0
      %190 = vmatprep.subr.mxu0 0.0
      %191 = vmatpush1.msra.mxu0 0.0
      %192 = vmatprep.subr.mxu0 0.0
      %193 = vmatpush1.msra.mxu0 0.0
      %194 = vmatprep.subr.mxu0 0.0
      %195 = vmatpush1.msra.mxu0 0.0
      %196 = vmatprep.subr.mxu0 0.0
      %197 = vmatpush1.msra.mxu0 0.0
      %198 = vmatprep.subr.mxu0 0.0
      %199 = vmatpush1.msra.mxu0 0.0
      %200 = vmatprep.subr.mxu0 0.0
      %201 = vmatpush1.msra.mxu0 0.0
      %202 = vmatprep.mubr.f32.mxu0 0.0
      %203 = vmatmul.mubr.f32.gmra.mrb[0].mxu0 %v133
      %v204 = vpop.f32.mrb[0].mxu0
      %v205 = vadd.f32 %v129, %v204
      %v206 = vpop.f32.mrb[0].mxu0
      %207 = vmatprep.mubr.f32.mxu0 0.0
      %208 = vmatmul.mubr.f32.gmra.mrb[0].mxu0 %v136
      %v209 = vpop.f32.mrb[0].mxu0
      %v210 = vadd.f32 %v129, %v209
      %v211 = vpop.f32.mrb[0].mxu0
      %212 = vdwg.mxu0
      %v213 = vmul.f32 %v205, 0.5
      %v214 = vmul.f32 %v210, 0.5
      %v215 = vmul.f32 %v205, 0.70710677
      %v216 = vmul.f32 %v210, 0.70710677
      %v217 = verf.f32.pop %v215
      %v218 = verf.f32.pop %v216
      %v219 = vadd.f32 %v217, 1.0
      %v220 = vadd.f32 %v218, 1.0
      %v221 = vmul.f32 %v213, %v219
      %v222 = vmul.f32 %v214, %v220
      %vm223 = vcmask 130048
      %v224 = vsel %vm223, %v221, 0.0
      %225 = vadd.xlane.f32.xlu0 %v224
      %v226 = vpop.xlane.xlu0 %225
      %v227 = vsel %vm223, %v222, 0.0
      %228 = vadd.xlane.f32.xlu0 %v227
      %v229 = vpop.xlane.xlu0 %228
      %v230 = vrcp.pop 16.0
      %v231 = vmul.f32 %v226, %v230
      %v232 = vmul.f32 %v229, %v230
      %v233 = vsub.f32 %v221, %v231
      %v234 = vsub.f32 %v222, %v232
      %v235 = vmul.f32 %v233, %v233
      %v236 = vmul.f32 %v234, %v234
      %v237 = vsel %vm223, %v235, 0.0
      %238 = vadd.xlane.f32.xlu0 %v237
      %v239 = vpop.xlane.xlu0 %238
      %v240 = vsel %vm223, %v236, 0.0
      %241 = vadd.xlane.f32.xlu0 %v240
      %v242 = vpop.xlane.xlu0 %241
      %v243 = vmul.f32 %v239, %v230
      %v244 = vmul.f32 %v242, %v230
      %v245 = vadd.f32 %v243, 1e-12
      %v246 = vadd.f32 %v244, 1e-12
      %v247 = vrsqrt.pop %v245
      %v248 = vrsqrt.pop %v246
      %v249 = vmul.f32 %v233, %v247
      %v250 = vmul.f32 %v234, %v248
      %v251 = vld [vmem:[#allocation9] sm:$0x1]
      %v253 = vlaneseq
      %v254 = vshrl.u32 %v253, 7
      %v255 = vsub.s32 0, %v254
      %v256 = vrot.slane %v251, %v255
      %v258 = vmul.f32 %v249, %v256
      %v259 = vmul.f32 %v250, %v256
      %v260 = vld [vmem:[#allocation11] sm:$0x1]
      %v262 = vlaneseq
      %v263 = vshrl.u32 %v262, 7
      %v264 = vsub.s32 0, %v263
      %v265 = vrot.slane %v260, %v264
      %v267 = vadd.f32 %v258, %v265
      %v268 = vadd.f32 %v259, %v265
      %269 = vst.msk [vmem:[#allocation2] sm:$0xff] %vm223, %v267
      %270 = vst.msk [vmem:[#allocation2 + $0x8] sm:$0xff] %vm223, %v268
    $region61: #{tpu_custom_call.1} parent=1 // pred_fallthru
      _
    %v271 = vld [vmem:[#allocation2] sm:$0xff]
    %v272 = vld [vmem:[#allocation2 + $0x8] sm:$0xff]
    %v273 = vld [vmem:[#allocation12] sm:$0xff]
    %v274 = vld [vmem:[#allocation12 + $0x8] sm:$0xff]
    %v275 = vld [vmem:[#allocation12 + $0x10] sm:$0xff]
    %v276 = vld [vmem:[#allocation12 + $0x18] sm:$0xff]
    %v277 = vld [vmem:[#allocation14] sm:$0x3]
    %v279 = vlaneseq
    %v280 = vshrl.u32 %v279, 7
    %v281 = vsub.s32 0, %v280
    %v282 = vrot.slane %v277, %v281
    %v283 = vlaneseq
    %v284 = vshrl.u32 %v283, 7
    %v285 = vsub.s32 1, %v284
    %v286 = vrot.slane %v277, %v285
    %vm289 = vcmask 130048
    %v291 = vsel %vm289, %v271, 0
    %v294 = vsel %vm289, %v272, 0
    %296 = vmatprep.subr.mxu0 %v274
    %297 = vmatpush1.msra.mxu0 %v273
    %298 = vmatprep.subr.mxu0 %v276
    %299 = vmatpush1.msra.mxu0 %v275
    %300 = vmatprep.subr.mxu0 0.0
    %301 = vmatpush1.msra.mxu0 0.0
    %302 = vmatprep.subr.mxu0 0.0
    %303 = vmatpush1.msra.mxu0 0.0
    %304 = vmatprep.subr.mxu0 0.0
    %305 = vmatpush1.msra.mxu0 0.0
    %306 = vmatprep.subr.mxu0 0.0
    %307 = vmatpush1.msra.mxu0 0.0
    %308 = vmatprep.subr.mxu0 0.0
    %309 = vmatpush1.msra.mxu0 0.0
    %310 = vmatprep.subr.mxu0 0.0
    %311 = vmatpush1.msra.mxu0 0.0
    %312 = vmatprep.subr.mxu0 0.0
    %313 = vmatpush1.msra.mxu0 0.0
    %314 = vmatprep.subr.mxu0 0.0
    %315 = vmatpush1.msra.mxu0 0.0
    %316 = vmatprep.subr.mxu0 0.0
    %317 = vmatpush1.msra.mxu0 0.0
    %318 = vmatprep.subr.mxu0 0.0
    %319 = vmatpush1.msra.mxu0 0.0
    %320 = vmatprep.subr.mxu0 0.0
    %321 = vmatpush1.msra.mxu0 0.0
    %322 = vmatprep.subr.mxu0 0.0
    %323 = vmatpush1.msra.mxu0 0.0
    %324 = vmatprep.subr.mxu0 0.0
    %325 = vmatpush1.msra.mxu0 0.0
    %326 = vmatprep.subr.mxu0 0.0
    %327 = vmatpush1.msra.mxu0 0.0
    %328 = vmatprep.subr.mxu0 0.0
    %329 = vmatpush1.msra.mxu0 0.0
    %330 = vmatprep.subr.mxu0 0.0
    %331 = vmatpush1.msra.mxu0 0.0
    %332 = vmatprep.subr.mxu0 0.0
    %333 = vmatpush1.msra.mxu0 0.0
    %334 = vmatprep.subr.mxu0 0.0
    %335 = vmatpush1.msra.mxu0 0.0
    %336 = vmatprep.subr.mxu0 0.0
    %337 = vmatpush1.msra.mxu0 0.0
    %338 = vmatprep.subr.mxu0 0.0
    %339 = vmatpush1.msra.mxu0 0.0
    %340 = vmatprep.subr.mxu0 0.0
    %341 = vmatpush1.msra.mxu0 0.0
    %342 = vmatprep.subr.mxu0 0.0
    %343 = vmatpush1.msra.mxu0 0.0
    %344 = vmatprep.subr.mxu0 0.0
    %345 = vmatpush1.msra.mxu0 0.0
    %346 = vmatprep.subr.mxu0 0.0
    %347 = vmatpush1.msra.mxu0 0.0
    %348 = vmatprep.subr.mxu0 0.0
    %349 = vmatpush1.msra.mxu0 0.0
    %350 = vmatprep.subr.mxu0 0.0
    %351 = vmatpush1.msra.mxu0 0.0
    %352 = vmatprep.subr.mxu0 0.0
    %353 = vmatpush1.msra.mxu0 0.0
    %354 = vmatprep.subr.mxu0 0.0
    %355 = vmatpush1.msra.mxu0 0.0
    %356 = vmatprep.subr.mxu0 0.0
    %357 = vmatpush1.msra.mxu0 0.0
    %358 = vmatprep.subr.mxu0 0.0
    %359 = vmatpush1.msra.mxu0 0.0
    %360 = vmatprep.mubr.f32.mxu0 0.0
    %361 = vmatmul.mubr.f32.gmra.mrb[0].mxu0 %v291
    %v362 = vpop.f32.mrb[0].mxu0
    %v363 = vadd.f32 %v282, %v362
    %v364 = vpop.f32.mrb[0].mxu0
    %v365 = vadd.f32 %v286, %v364
    %366 = vmatprep.mubr.f32.mxu0 0.0
    %367 = vmatmul.mubr.f32.gmra.mrb[0].mxu0 %v294
    %v368 = vpop.f32.mrb[0].mxu0
    %v369 = vadd.f32 %v282, %v368
    %v370 = vpop.f32.mrb[0].mxu0
    %v371 = vadd.f32 %v286, %v370
    %372 = vdwg.mxu0
    %373 = vst [vmem:[#allocation15] sm:$0xff] %v363
    %374 = vst [vmem:[#allocation15 + $0x8] sm:$0xff] %v365
    %375 = vst [vmem:[#allocation15 + $0x10] sm:$0xff] %v369
    %376 = vst [vmem:[#allocation15 + $0x18] sm:$0xff] %v371
    // Predicated region
    $region62: #{tpu_custom_call.1} parent=1 // pred_check
      _
    $region63: #{tpu_custom_call.1} parent=1 // pred_check_branch
      %378 = sbr.rel (0) target = $region65
    $region64: #{tpu_custom_call.1} parent=1 // pred_region
      %s380 = ssub.s32 512, 512
      %381 = vsyncadd [#allocation5], %s380
      %s382 = sshll.u32 [#allocation15], 4
      %s383 = int_to_ptr.vmem [resolvable:$true] %s382
      %388 = dma.vmem_to_hbm [thread:$0]  %s383, 512, %s7, [#allocation5], 256, 256, 16
    $region65: #{tpu_custom_call.1} parent=1 // pred_fallthru
      _
    // Predicated region
    $region66: #{tpu_custom_call.1} parent=1 // pred_check
      _
    $region67: #{tpu_custom_call.1} parent=1 // pred_check_branch
      %390 = sbr.rel (0) target = $region69
    $region68: #{tpu_custom_call.1} parent=1 // pred_region
      %391 = dma.done [#allocation5], 512
    $region69: #{tpu_custom_call.1} parent=1 // pred_fallthru
      _
    %392 = vsyncpa [#allocation4], 1
    %393 = vsyncpa [#allocation7], 1
    %394 = vsyncpa [#allocation10], 1
    %395 = vsyncpa [#allocation13], 1
    %396 = vsyncpa [#allocation5], 1

// kernel: tpu_custom_call.1
$region0: #{tpu_custom_call.1}
  #allocation0 [shape = 'u32[]', space=smem, size = 0x4, offset = 0x4, fixed_abs, tag = 'smem constant byte address 0x4 - core index']
  #allocation1 [shape = 'u32[144,128]{1,0:T(1,128)}', space=vmem, size = 0x12000, scoped, tag = 'internal scratch']
  #allocation2 [shape = 'f32[16,16]{1,0:T(8,128)}', space=vmem, size = 0x2000, scoped, tag = 'scratch operand']
  %s0 = inlined_call_operand.hbm [shape: f32[16,32], index: 0, kind: input, shape index: {}]
  %s1 = inlined_call_operand.hbm [shape: f32[32,16], index: 1, kind: input, shape index: {}]
  %s2 = inlined_call_operand.hbm [shape: f32[1,16], index: 2, kind: input, shape index: {}]
  %s3 = inlined_call_operand.hbm [shape: f32[1,16], index: 3, kind: input, shape index: {}]
  %s4 = inlined_call_operand.hbm [shape: f32[1,16], index: 4, kind: input, shape index: {}]
  %s5 = inlined_call_operand.hbm [shape: f32[16,256], index: 5, kind: input, shape index: {}]
  %s6 = inlined_call_operand.hbm [shape: f32[1,256], index: 6, kind: input, shape index: {}]
  %s7 = inlined_call_operand.hbm [shape: f32[16,256], index: 7, kind: output, shape index: {}]
  %s8 = sld [smem:[#allocation0]]
  $region70: #{tpu_custom_call.1} parent=0
    _
  %s10 = ssub.s32 1, %s8
  %s11 = scalar_select 0, %s10, %s8
  $region1: #{tpu_custom_call.1} parent=0
    #allocation3 [shape = 'u8[8192]{0}', space=vmem, size = 0x2000, scoped, tag = 'input window, operand 0, single buffered']
    #allocation4 [shape = 's32[1]{0}', space=sflag, size = 0x4, scoped, tag = 'scoped memory for tpu_custom_call.1']
    #allocation5 [shape = 's32[1]{0}', space=sflag, size = 0x4, scoped, tag = 'scoped memory for tpu_custom_call.1']
    #allocation6 [shape = 'u8[16384]{0}', space=vmem, size = 0x4000, scoped, tag = 'input window, operand 1, single buffered']
    #allocation7 [shape = 's32[1]{0}', space=sflag, size = 0x4, scoped, tag = 'scoped memory for tpu_custom_call.1']
    #allocation8 [shape = 'u8[512]{0}', space=vmem, size = 0x400, scoped, tag = 'input window, operand 2, single buffered']
    #allocation9 [shape = 'u8[512]{0}', space=vmem, size = 0x400, scoped, tag = 'input window, operand 3, single buffered']
    #allocation10 [shape = 's32[1]{0}', space=sflag, size = 0x4, scoped, tag = 'scoped memory for tpu_custom_call.1']
    #allocation11 [shape = 'u8[512]{0}', space=vmem, size = 0x400, scoped, tag = 'input window, operand 4, single buffered']
    #allocation12 [shape = 'u8[16384]{0}', space=vmem, size = 0x4000, scoped, tag = 'input window, operand 5, single buffered']
    #allocation13 [shape = 's32[1]{0}', space=sflag, size = 0x4, scoped, tag = 'scoped memory for tpu_custom_call.1']
    #allocation14 [shape = 'u8[1024]{0}', space=vmem, size = 0x400, scoped, tag = 'input window, operand 6, single buffered']
    #allocation15 [shape = 'u8[16384]{0}', space=vmem, size = 0x4000, scoped, tag = 'output window, operand 0, single buffered']
    %12 = vsyncpa [#allocation4], 0
    %13 = vsyncpa [#allocation7], 0
    %14 = vsyncpa [#allocation10], 0
    %15 = vsyncpa [#allocation13], 0
    %16 = vsyncpa [#allocation5], 0
    // Predicated region
    $region2: #{tpu_custom_call.1} parent=1 // pred_check
      _
    $region3: #{tpu_custom_call.1} parent=1 // pred_check_branch
      %18 = sbr.rel (0) target = $region5
    $region4: #{tpu_custom_call.1} parent=1 // pred_region
      %s20 = ssub.s32 256, 256
      %21 = vsyncadd [#allocation4], %s20
      %s22 = sshll.u32 [#allocation3], 4
      %s23 = int_to_ptr.vmem [resolvable:$true] %s22
      %28 = dma.hbm_to_vmem [thread:$0]  %s0, 256, %s23, [#allocation4], 128, 128, 8
    $region5: #{tpu_custom_call.1} parent=1 // pred_fallthru
      _
    // Predicated region
    $region6: #{tpu_custom_call.1} parent=1 // pred_check
      _
    $region7: #{tpu_custom_call.1} parent=1 // pred_check_branch
      %30 = sbr.rel (0) target = $region9
    $region8: #{tpu_custom_call.1} parent=1 // pred_region
      %s32 = ssub.s32 512, 512
      %33 = vsyncadd [#allocation7], %s32
      %s34 = sshll.u32 [#allocation6], 4
      %s35 = int_to_ptr.vmem [resolvable:$true] %s34
      %40 = dma.hbm_to_vmem [thread:$0]  %s1, 512, %s35, [#allocation7], 128, 128, 8
    $region9: #{tpu_custom_call.1} parent=1 // pred_fallthru
      _
    // Predicated region
    $region10: #{tpu_custom_call.1} parent=1 // pred_check
      _
    $region11: #{tpu_custom_call.1} parent=1 // pred_check_branch
      %42 = sbr.rel (0) target = $region13
    $region12: #{tpu_custom_call.1} parent=1 // pred_region
      %s44 = ssub.s32 16, 16
      %45 = vsyncadd [#allocation7], %s44
      %s47 = sshll.u32 [#allocation8], 4
      %s48 = int_to_ptr.vmem [resolvable:$true] %s47
      %50 = dma.hbm_to_vmem [thread:$0]  %s2, 16, %s48, [#allocation7]
    $region13: #{tpu_custom_call.1} parent=1 // pred_fallthru
      _
    // Predicated region
    $region14: #{tpu_custom_call.1} parent=1 // pred_check
      _
    $region15: #{tpu_custom_call.1} parent=1 // pred_check_branch
      %52 = sbr.rel (0) target = $region17
    $region16: #{tpu_custom_call.1} parent=1 // pred_region
      %s54 = ssub.s32 16, 16
      %55 = vsyncadd [#allocation10], %s54
      %s57 = sshll.u32 [#allocation9], 4
      %s58 = int_to_ptr.vmem [resolvable:$true] %s57
      %60 = dma.hbm_to_vmem [thread:$0]  %s3, 16, %s58, [#allocation10]
    $region17: #{tpu_custom_call.1} parent=1 // pred_fallthru
      _
    // Predicated region
    $region18: #{tpu_custom_call.1} parent=1 // pred_check
      _
    $region19: #{tpu_custom_call.1} parent=1 // pred_check_branch
      %62 = sbr.rel (0) target = $region21
    $region20: #{tpu_custom_call.1} parent=1 // pred_region
      %s64 = ssub.s32 16, 16
      %65 = vsyncadd [#allocation10], %s64
      %s67 = sshll.u32 [#allocation11], 4
      %s68 = int_to_ptr.vmem [resolvable:$true] %s67
      %70 = dma.hbm_to_vmem [thread:$0]  %s4, 16, %s68, [#allocation10]
    $region21: #{tpu_custom_call.1} parent=1 // pred_fallthru
      _
    // Predicated region
    $region22: #{tpu_custom_call.1} parent=1 // pred_check
      _
    $region23: #{tpu_custom_call.1} parent=1 // pred_check_branch
      %72 = sbr.rel (0) target = $region25
    $region24: #{tpu_custom_call.1} parent=1 // pred_region
      %s74 = ssub.s32 512, 512
      %75 = vsyncadd [#allocation13], %s74
      %s76 = sshll.u32 [#allocation12], 4
      %s77 = int_to_ptr.vmem [resolvable:$true] %s76
      %82 = dma.hbm_to_vmem [thread:$0]  %s5, 512, %s77, [#allocation13], 256, 256, 16
    $region25: #{tpu_custom_call.1} parent=1 // pred_fallthru
      _
    // Predicated region
    $region26: #{tpu_custom_call.1} parent=1 // pred_check
      _
    $region27: #{tpu_custom_call.1} parent=1 // pred_check_branch
      %84 = sbr.rel (0) target = $region29
    $region28: #{tpu_custom_call.1} parent=1 // pred_region
      %s86 = ssub.s32 32, 32
      %87 = vsyncadd [#allocation13], %s86
      %s89 = sshll.u32 [#allocation14], 4
      %s90 = int_to_ptr.vmem [resolvable:$true] %s89
      %92 = dma.hbm_to_vmem [thread:$0]  %s6, 32, %s90, [#allocation13]
    $region29: #{tpu_custom_call.1} parent=1 // pred_fallthru
      _
    // Predicated region
    $region30: #{tpu_custom_call.1} parent=1 // pred_check
      _
    $region31: #{tpu_custom_call.1} parent=1 // pred_check_branch
      %94 = sbr.rel (0) target = $region33
    $region32: #{tpu_custom_call.1} parent=1 // pred_region
      %95 = dma.done [#allocation4], 256
    $region33: #{tpu_custom_call.1} parent=1 // pred_fallthru
      _
    // Predicated region
    $region34: #{tpu_custom_call.1} parent=1 // pred_check
      _
    $region35: #{tpu_custom_call.1} parent=1 // pred_check_branch
      %97 = sbr.rel (0) target = $region37
    $region36: #{tpu_custom_call.1} parent=1 // pred_region
      %98 = dma.done [#allocation7], 512
    $region37: #{tpu_custom_call.1} parent=1 // pred_fallthru
      _
    // Predicated region
    $region38: #{tpu_custom_call.1} parent=1 // pred_check
      _
    $region39: #{tpu_custom_call.1} parent=1 // pred_check_branch
      %100 = sbr.rel (0) target = $region41
    $region40: #{tpu_custom_call.1} parent=1 // pred_region
      %101 = dma.done [#allocation7], 16
    $region41: #{tpu_custom_call.1} parent=1 // pred_fallthru
      _
    // Predicated region
    $region42: #{tpu_custom_call.1} parent=1 // pred_check
      _
    $region43: #{tpu_custom_call.1} parent=1 // pred_check_branch
      %103 = sbr.rel (0) target = $region45
    $region44: #{tpu_custom_call.1} parent=1 // pred_region
      %104 = dma.done [#allocation10], 16
    $region45: #{tpu_custom_call.1} parent=1 // pred_fallthru
      _
    // Predicated region
    $region46: #{tpu_custom_call.1} parent=1 // pred_check
      _
    $region47: #{tpu_custom_call.1} parent=1 // pred_check_branch
      %106 = sbr.rel (0) target = $region49
    $region48: #{tpu_custom_call.1} parent=1 // pred_region
      %107 = dma.done [#allocation10], 16
    $region49: #{tpu_custom_call.1} parent=1 // pred_fallthru
      _
    // Predicated region
    $region50: #{tpu_custom_call.1} parent=1 // pred_check
      _
    $region51: #{tpu_custom_call.1} parent=1 // pred_check_branch
      %109 = sbr.rel (0) target = $region53
    $region52: #{tpu_custom_call.1} parent=1 // pred_region
      %110 = dma.done [#allocation13], 512
    $region53: #{tpu_custom_call.1} parent=1 // pred_fallthru
      _
    // Predicated region
    $region54: #{tpu_custom_call.1} parent=1 // pred_check
      _
    $region55: #{tpu_custom_call.1} parent=1 // pred_check_branch
      %112 = sbr.rel (0) target = $region57
    $region56: #{tpu_custom_call.1} parent=1 // pred_region
      %113 = dma.done [#allocation13], 32
    $region57: #{tpu_custom_call.1} parent=1 // pred_fallthru
      _
    %p114 = scmp.eq.s32.totalorder 0, 0
    // Predicated region
    $region58: #{tpu_custom_call.1} parent=1 // pred_check
      %p115 = pneg %p114
    $region59: #{tpu_custom_call.1} parent=1 // pred_check_branch
      %117 = sbr.rel (%p115) target = $region61
    $region60: #{tpu_custom_call.1} parent=1 // pred_region
      %v118 = vld [vmem:[#allocation3] sm:$0xff]
      %v119 = vld [vmem:[#allocation3 + $0x8] sm:$0xff]
      %v120 = vld [vmem:[#allocation6] sm:$0xff]
      %v121 = vld [vmem:[#allocation6 + $0x8] sm:$0xff]
      %v122 = vld [vmem:[#allocation6 + $0x10] sm:$0xff]
      %v123 = vld [vmem:[#allocation6 + $0x18] sm:$0xff]
      %v124 = vld [vmem:[#allocation8] sm:$0x1]
      %v126 = vlaneseq
      %v127 = vshrl.u32 %v126, 7
      %v128 = vsub.s32 0, %v127
      %v129 = vrot.slane %v124, %v128
      %vm131 = vcmask 261120
      %v133 = vsel %vm131, %v118, 0
      %v136 = vsel %vm131, %v119, 0
      %138 = vmatprep.subr.mxu0 0.0
      %139 = vmatpush1.msra.mxu0 %v120
      %140 = vmatprep.subr.mxu0 0.0
      %141 = vmatpush1.msra.mxu0 %v121
      %142 = vmatprep.subr.mxu0 0.0
      %143 = vmatpush1.msra.mxu0 %v122
      %144 = vmatprep.subr.mxu0 0.0
      %145 = vmatpush1.msra.mxu0 %v123
      %146 = vmatprep.subr.mxu0 0.0
      %147 = vmatpush1.msra.mxu0 0.0
      %148 = vmatprep.subr.mxu0 0.0
      %149 = vmatpush1.msra.mxu0 0.0
      %150 = vmatprep.subr.mxu0 0.0
      %151 = vmatpush1.msra.mxu0 0.0
      %152 = vmatprep.subr.mxu0 0.0
      %153 = vmatpush1.msra.mxu0 0.0
      %154 = vmatprep.subr.mxu0 0.0
      %155 = vmatpush1.msra.mxu0 0.0
      %156 = vmatprep.subr.mxu0 0.0
      %157 = vmatpush1.msra.mxu0 0.0
      %158 = vmatprep.subr.mxu0 0.0
      %159 = vmatpush1.msra.mxu0 0.0
      %160 = vmatprep.subr.mxu0 0.0
      %161 = vmatpush1.msra.mxu0 0.0
      %162 = vmatprep.subr.mxu0 0.0
      %163 = vmatpush1.msra.mxu0 0.0
      %164 = vmatprep.subr.mxu0 0.0
      %165 = vmatpush1.msra.mxu0 0.0
      %166 = vmatprep.subr.mxu0 0.0
      %167 = vmatpush1.msra.mxu0 0.0
      %168 = vmatprep.subr.mxu0 0.0
      %169 = vmatpush1.msra.mxu0 0.0
      %170 = vmatprep.subr.mxu0 0.0
      %171 = vmatpush1.msra.mxu0 0.0
      %172 = vmatprep.subr.mxu0 0.0
      %173 = vmatpush1.msra.mxu0 0.0
      %174 = vmatprep.subr.mxu0 0.0
      %175 = vmatpush1.msra.mxu0 0.0
      %176 = vmatprep.subr.mxu0 0.0
      %177 = vmatpush1.msra.mxu0 0.0
      %178 = vmatprep.subr.mxu0 0.0
      %179 = vmatpush1.msra.mxu0 0.0
      %180 = vmatprep.subr.mxu0 0.0
      %181 = vmatpush1.msra.mxu0 0.0
      %182 = vmatprep.subr.mxu0 0.0
      %183 = vmatpush1.msra.mxu0 0.0
      %184 = vmatprep.subr.mxu0 0.0
      %185 = vmatpush1.msra.mxu0 0.0
      %186 = vmatprep.subr.mxu0 0.0
      %187 = vmatpush1.msra.mxu0 0.0
      %188 = vmatprep.subr.mxu0 0.0
      %189 = vmatpush1.msra.mxu0 0.0
      %190 = vmatprep.subr.mxu0 0.0
      %191 = vmatpush1.msra.mxu0 0.0
      %192 = vmatprep.subr.mxu0 0.0
      %193 = vmatpush1.msra.mxu0 0.0
      %194 = vmatprep.subr.mxu0 0.0
      %195 = vmatpush1.msra.mxu0 0.0
      %196 = vmatprep.subr.mxu0 0.0
      %197 = vmatpush1.msra.mxu0 0.0
      %198 = vmatprep.subr.mxu0 0.0
      %199 = vmatpush1.msra.mxu0 0.0
      %200 = vmatprep.subr.mxu0 0.0
      %201 = vmatpush1.msra.mxu0 0.0
      %202 = vmatprep.mubr.f32.mxu0 0.0
      %203 = vmatmul.mubr.f32.gmra.mrb[0].mxu0 %v133
      %v204 = vpop.f32.mrb[0].mxu0
      %v205 = vadd.f32 %v129, %v204
      %v206 = vpop.f32.mrb[0].mxu0
      %207 = vmatprep.mubr.f32.mxu0 0.0
      %208 = vmatmul.mubr.f32.gmra.mrb[0].mxu0 %v136
      %v209 = vpop.f32.mrb[0].mxu0
      %v210 = vadd.f32 %v129, %v209
      %v211 = vpop.f32.mrb[0].mxu0
      %212 = vdwg.mxu0
      %v213 = vmul.f32 %v205, 0.5
      %v214 = vmul.f32 %v210, 0.5
      %v215 = vmul.f32 %v205, 0.70710677
      %v216 = vmul.f32 %v210, 0.70710677
      %v217 = verf.f32.pop %v215
      %v218 = verf.f32.pop %v216
      %v219 = vadd.f32 %v217, 1.0
      %v220 = vadd.f32 %v218, 1.0
      %v221 = vmul.f32 %v213, %v219
      %v222 = vmul.f32 %v214, %v220
      %vm223 = vcmask 130048
      %v224 = vsel %vm223, %v221, 0.0
      %225 = vadd.xlane.f32.xlu0 %v224
      %v226 = vpop.xlane.xlu0 %225
      %v227 = vsel %vm223, %v222, 0.0
      %228 = vadd.xlane.f32.xlu0 %v227
      %v229 = vpop.xlane.xlu0 %228
      %v230 = vrcp.pop 16.0
      %v231 = vmul.f32 %v226, %v230
      %v232 = vmul.f32 %v229, %v230
      %v233 = vsub.f32 %v221, %v231
      %v234 = vsub.f32 %v222, %v232
      %v235 = vmul.f32 %v233, %v233
      %v236 = vmul.f32 %v234, %v234
      %v237 = vsel %vm223, %v235, 0.0
      %238 = vadd.xlane.f32.xlu0 %v237
      %v239 = vpop.xlane.xlu0 %238
      %v240 = vsel %vm223, %v236, 0.0
      %241 = vadd.xlane.f32.xlu0 %v240
      %v242 = vpop.xlane.xlu0 %241
      %v243 = vmul.f32 %v239, %v230
      %v244 = vmul.f32 %v242, %v230
      %v245 = vadd.f32 %v243, 1e-12
      %v246 = vadd.f32 %v244, 1e-12
      %v247 = vrsqrt.pop %v245
      %v248 = vrsqrt.pop %v246
      %v249 = vmul.f32 %v233, %v247
      %v250 = vmul.f32 %v234, %v248
      %v251 = vld [vmem:[#allocation9] sm:$0x1]
      %v253 = vlaneseq
      %v254 = vshrl.u32 %v253, 7
      %v255 = vsub.s32 0, %v254
      %v256 = vrot.slane %v251, %v255
      %v258 = vmul.f32 %v249, %v256
      %v259 = vmul.f32 %v250, %v256
      %v260 = vld [vmem:[#allocation11] sm:$0x1]
      %v262 = vlaneseq
      %v263 = vshrl.u32 %v262, 7
      %v264 = vsub.s32 0, %v263
      %v265 = vrot.slane %v260, %v264
      %v267 = vadd.f32 %v258, %v265
      %v268 = vadd.f32 %v259, %v265
      %269 = vst.msk [vmem:[#allocation2] sm:$0xff] %vm223, %v267
      %270 = vst.msk [vmem:[#allocation2 + $0x8] sm:$0xff] %vm223, %v268
    $region61: #{tpu_custom_call.1} parent=1 // pred_fallthru
      _
    %v271 = vld [vmem:[#allocation2] sm:$0xff]
    %v272 = vld [vmem:[#allocation2 + $0x8] sm:$0xff]
    %v273 = vld [vmem:[#allocation12] sm:$0xff]
    %v274 = vld [vmem:[#allocation12 + $0x8] sm:$0xff]
    %v275 = vld [vmem:[#allocation12 + $0x10] sm:$0xff]
    %v276 = vld [vmem:[#allocation12 + $0x18] sm:$0xff]
    %v277 = vld [vmem:[#allocation14] sm:$0x3]
    %v279 = vlaneseq
    %v280 = vshrl.u32 %v279, 7
    %v281 = vsub.s32 0, %v280
    %v282 = vrot.slane %v277, %v281
    %v283 = vlaneseq
    %v284 = vshrl.u32 %v283, 7
    %v285 = vsub.s32 1, %v284
    %v286 = vrot.slane %v277, %v285
    %vm289 = vcmask 130048
    %v291 = vsel %vm289, %v271, 0
    %v294 = vsel %vm289, %v272, 0
    %296 = vmatprep.subr.mxu0 %v274
    %297 = vmatpush1.msra.mxu0 %v273
    %298 = vmatprep.subr.mxu0 %v276
    %299 = vmatpush1.msra.mxu0 %v275
    %300 = vmatprep.subr.mxu0 0.0
    %301 = vmatpush1.msra.mxu0 0.0
    %302 = vmatprep.subr.mxu0 0.0
    %303 = vmatpush1.msra.mxu0 0.0
    %304 = vmatprep.subr.mxu0 0.0
    %305 = vmatpush1.msra.mxu0 0.0
    %306 = vmatprep.subr.mxu0 0.0
    %307 = vmatpush1.msra.mxu0 0.0
    %308 = vmatprep.subr.mxu0 0.0
    %309 = vmatpush1.msra.mxu0 0.0
    %310 = vmatprep.subr.mxu0 0.0
    %311 = vmatpush1.msra.mxu0 0.0
    %312 = vmatprep.subr.mxu0 0.0
    %313 = vmatpush1.msra.mxu0 0.0
    %314 = vmatprep.subr.mxu0 0.0
    %315 = vmatpush1.msra.mxu0 0.0
    %316 = vmatprep.subr.mxu0 0.0
    %317 = vmatpush1.msra.mxu0 0.0
    %318 = vmatprep.subr.mxu0 0.0
    %319 = vmatpush1.msra.mxu0 0.0
    %320 = vmatprep.subr.mxu0 0.0
    %321 = vmatpush1.msra.mxu0 0.0
    %322 = vmatprep.subr.mxu0 0.0
    %323 = vmatpush1.msra.mxu0 0.0
    %324 = vmatprep.subr.mxu0 0.0
    %325 = vmatpush1.msra.mxu0 0.0
    %326 = vmatprep.subr.mxu0 0.0
    %327 = vmatpush1.msra.mxu0 0.0
    %328 = vmatprep.subr.mxu0 0.0
    %329 = vmatpush1.msra.mxu0 0.0
    %330 = vmatprep.subr.mxu0 0.0
    %331 = vmatpush1.msra.mxu0 0.0
    %332 = vmatprep.subr.mxu0 0.0
    %333 = vmatpush1.msra.mxu0 0.0
    %334 = vmatprep.subr.mxu0 0.0
    %335 = vmatpush1.msra.mxu0 0.0
    %336 = vmatprep.subr.mxu0 0.0
    %337 = vmatpush1.msra.mxu0 0.0
    %338 = vmatprep.subr.mxu0 0.0
    %339 = vmatpush1.msra.mxu0 0.0
    %340 = vmatprep.subr.mxu0 0.0
    %341 = vmatpush1.msra.mxu0 0.0
    %342 = vmatprep.subr.mxu0 0.0
    %343 = vmatpush1.msra.mxu0 0.0
    %344 = vmatprep.subr.mxu0 0.0
    %345 = vmatpush1.msra.mxu0 0.0
    %346 = vmatprep.subr.mxu0 0.0
    %347 = vmatpush1.msra.mxu0 0.0
    %348 = vmatprep.subr.mxu0 0.0
    %349 = vmatpush1.msra.mxu0 0.0
    %350 = vmatprep.subr.mxu0 0.0
    %351 = vmatpush1.msra.mxu0 0.0
    %352 = vmatprep.subr.mxu0 0.0
    %353 = vmatpush1.msra.mxu0 0.0
    %354 = vmatprep.subr.mxu0 0.0
    %355 = vmatpush1.msra.mxu0 0.0
    %356 = vmatprep.subr.mxu0 0.0
    %357 = vmatpush1.msra.mxu0 0.0
    %358 = vmatprep.subr.mxu0 0.0
    %359 = vmatpush1.msra.mxu0 0.0
    %360 = vmatprep.mubr.f32.mxu0 0.0
    %361 = vmatmul.mubr.f32.gmra.mrb[0].mxu0 %v291
    %v362 = vpop.f32.mrb[0].mxu0
    %v363 = vadd.f32 %v282, %v362
    %v364 = vpop.f32.mrb[0].mxu0
    %v365 = vadd.f32 %v286, %v364
    %366 = vmatprep.mubr.f32.mxu0 0.0
    %367 = vmatmul.mubr.f32.gmra.mrb[0].mxu0 %v294
    %v368 = vpop.f32.mrb[0].mxu0
    %v369 = vadd.f32 %v282, %v368
    %v370 = vpop.f32.mrb[0].mxu0
    %v371 = vadd.f32 %v286, %v370
    %372 = vdwg.mxu0
    %373 = vst [vmem:[#allocation15] sm:$0xff] %v363
    %374 = vst [vmem:[#allocation15 + $0x8] sm:$0xff] %v365
    %375 = vst [vmem:[#allocation15 + $0x10] sm:$0xff] %v369
    %376 = vst [vmem:[#allocation15 + $0x18] sm:$0xff] %v371
    // Predicated region
    $region62: #{tpu_custom_call.1} parent=1 // pred_check
      _
    $region63: #{tpu_custom_call.1} parent=1 // pred_check_branch
      %378 = sbr.rel (0) target = $region65
    $region64: #{tpu_custom_call.1} parent=1 // pred_region
      %s380 = ssub.s32 512, 512
      %381 = vsyncadd [#allocation5], %s380
      %s382 = sshll.u32 [#allocation15], 4
      %s383 = int_to_ptr.vmem [resolvable:$true] %s382
      %388 = dma.vmem_to_hbm [thread:$0]  %s383, 512, %s7, [#allocation5], 256, 256, 16
    $region65: #{tpu_custom_call.1} parent=1 // pred_fallthru
      _
    // Predicated region
    $region66: #{tpu_custom_call.1} parent=1 // pred_check
      _
    $region67: #{tpu_custom_call.1} parent=1 // pred_check_branch
      %390 = sbr.rel (0) target = $region69
    $region68: #{tpu_custom_call.1} parent=1 // pred_region
      %391 = dma.done [#allocation5], 512
    $region69: #{tpu_custom_call.1} parent=1 // pred_fallthru
      _
    %392 = vsyncpa [#allocation4], 1
    %393 = vsyncpa [#allocation7], 1
    %394 = vsyncpa [#allocation10], 1
    %395 = vsyncpa [#allocation13], 1
    %396 = vsyncpa [#allocation5], 1

</llo_original>
